<compile_context>
chip_gen: v6e
topology: v6e:2x2x1
jax: 0.10.0
libtpu: 0.0.40
codegen_flags: <defaults>
</compile_context>

<pallas_src>
import jax
import jax.numpy as jnp
from jax import lax
from jax.experimental import pallas as pl
from jax.experimental.pallas import tpu as pltpu


# ---------------------------------------------------------------------------
# Kernel
# ---------------------------------------------------------------------------

def _tok_pos_stream_emb_kernel(ids_ref,          # SMEM (b, n) int32 (scalar prefetch)
                               tok_ref,          # VMEM (num_tokens, d)
                               pos_ref,          # VMEM (tile_n, d)
                               stream_ref,       # VMEM (num_streams, d)
                               out_ref,          # VMEM (1, num_streams, tile_n, d)
                               gat_ref):         # VMEM scratch (tile_n, d)
    bi = pl.program_id(0)
    nt = pl.program_id(1)
    tile_n = gat_ref.shape[0]

    # Gather tile_n token-embedding rows (dynamic sublane slices of the
    # VMEM-resident table), indices read as scalars from SMEM.
    def gather_row(i, carry):
        tid = ids_ref[bi, nt * tile_n + i]
        gat_ref[pl.ds(i, 1), :] = tok_ref[pl.ds(tid, 1), :]
        return carry

    lax.fori_loop(0, tile_n, gather_row, 0, unroll=True)

    # token + positional embedding: (tile_n, d)
    tp = gat_ref[...] + pos_ref[...]
    # add per-stream embedding and write one dense (1, s, tile_n, d) tile
    out_ref[...] = (
        stream_ref[...][:, None, :] + tp[None, :, :]
    )[None, ...].astype(out_ref.dtype)


# ---------------------------------------------------------------------------
# Wrapper
# ---------------------------------------------------------------------------

def token_and_pos_emb(token_emb, pos_emb, stream_emb, ids, *, tile_n=8):
    """Pallas implementation of TokenAndPosEmb.forward.

    token_emb:  (num_tokens, dim)   float32
    pos_emb:    (max_seq_len, dim)  float32
    stream_emb: (num_streams, dim)  float32
    ids:        (b, n)              int32 token ids
    returns:    (b * num_streams, n, dim)   -- '(b s) n d', batch-major
    """
    num_tokens, dim = token_emb.shape
    max_seq_len = pos_emb.shape[0]
    num_streams = stream_emb.shape[0]
    b, n = ids.shape

    assert n <= max_seq_len, "sequence longer than max_seq_len"
    assert n % tile_n == 0, "pad n to a multiple of tile_n"
    # Embedding table must fit (double-buffered) in VMEM for this variant.
    assert 2 * num_tokens * dim * 4 < 16 * 1024 * 1024, \
        "token table too large for VMEM-resident gather (see TODO above)"

    grid = (b, n // tile_n)

    out4 = pl.pallas_call(
        _tok_pos_stream_emb_kernel,
        out_shape=jax.ShapeDtypeStruct((b, num_streams, n, dim), token_emb.dtype),
        grid_spec=pltpu.PrefetchScalarGridSpec(
            num_scalar_prefetch=1,
            grid=grid,
            in_specs=[
                # token table: full block, constant index -> DMA'd once, stays
                # resident in VMEM across the whole grid.
                pl.BlockSpec((num_tokens, dim), lambda bi, nt, ids: (0, 0)),
                # positional rows for this tile: (tile_n, dim)
                pl.BlockSpec((tile_n, dim), lambda bi, nt, ids: (nt, 0)),
                # stream embeddings: full block, resident.
                pl.BlockSpec((num_streams, dim), lambda bi, nt, ids: (0, 0)),
            ],
            out_specs=pl.BlockSpec(
                (1, num_streams, tile_n, dim),
                lambda bi, nt, ids: (bi, 0, nt, 0),
            ),
            scratch_shapes=[pltpu.VMEM((tile_n, dim), jnp.float32)],
        ),
        compiler_params=pltpu.CompilerParams(
            dimension_semantics=("parallel", "parallel"),
            vmem_limit_bytes=64 * 1024 * 1024,
        ),
    )(ids.astype(jnp.int32), token_emb, pos_emb, stream_emb)

    # (b, s, n, d) -> '(b s) n d' : contiguous merge of leading dims, free.
    return out4.reshape(b * num_streams, n, dim)


# ---------------------------------------------------------------------------
# Demo / correctness check
# ---------------------------------------------------------------------------

if __name__ == "__main__":
    # Small config consistent with the module; dim chosen lane-dense (=128).
    dim = 128
    num_tokens = 256
    max_seq_len = 64
    num_streams = 2
    batch, seq = 2, 32

    key = jax.random.PRNGKey(0)
    k_tok, k_pos, k_stream, k_ids = jax.random.split(key, 4)

    # nn.Embedding default init ~ N(0,1); stream_emb ~ N(0, 0.02)
    token_emb = jax.random.normal(k_tok, (num_tokens, dim), jnp.float32)
    pos_emb = jax.random.normal(k_pos, (max_seq_len, dim), jnp.float32)
    stream_emb = 0.02 * jax.random.normal(k_stream, (num_streams, dim), jnp.float32)
    ids = jax.random.randint(k_ids, (batch, seq), 0, num_tokens, dtype=jnp.int32)

    out = token_and_pos_emb(token_emb, pos_emb, stream_emb, ids, tile_n=8)
    out = jax.block_until_ready(out)

    assert out.shape == (batch * num_streams, seq, dim)
    assert bool(jnp.all(jnp.isfinite(out)))

    # Pure-JAX reference: einx.add('b n d, n d, s d -> (b s) n d', ...)
    ref = (
        jnp.take(token_emb, ids, axis=0)[:, None, :, :]      # (b, 1, n, d)
        + pos_emb[:seq][None, None, :, :]                     # (1, 1, n, d)
        + stream_emb[None, :, None, :]                        # (1, s, 1, d)
    ).reshape(batch * num_streams, seq, dim)

    assert bool(jnp.allclose(out, ref, atol=1e-6, rtol=1e-6)), "mismatch vs reference"

    print("KERNEL_OK")
</pallas_src>

<mosaic_0001>
module attributes {stable_mosaic.version = 11 : i64} {
  func.func @_tok_pos_stream_emb_kernel(%arg0: i32, %arg1: i32, %arg2: memref<2x32xi32, #tpu.memory_space<smem>>, %arg3: memref<256x128xf32, #tpu.memory_space<vmem>>, %arg4: memref<8x128xf32, #tpu.memory_space<vmem>>, %arg5: memref<2x128xf32, #tpu.memory_space<vmem>>, %arg6: memref<1x2x8x128xf32, #tpu.memory_space<vmem>>, %arg7: memref<8x128xf32, #tpu.memory_space<vmem>>) attributes {dimension_semantics = [#tpu.dimension_semantics<parallel>, #tpu.dimension_semantics<parallel>], iteration_bounds = array<i64: 2, 4>, scalar_prefetch = 1 : i64, scratch_operands = 1 : i64, tpu.core_type = #tpu.core_type<tc>, window_params = [{pipeline_mode = #tpu.pipeline_mode<synchronous>, transform_indices = @transform_0, window_bounds = array<i64: 256, 128>}, {transform_indices = @transform_1, window_bounds = array<i64: 8, 128>}, {pipeline_mode = #tpu.pipeline_mode<synchronous>, transform_indices = @transform_2, window_bounds = array<i64: 2, 128>}, {transform_indices = @transform_3, window_bounds = array<i64: 1, 2, 8, 128>}]} {
    %c0_i32 = arith.constant 0 : i32
    %c8_i32 = arith.constant 8 : i32
    %0 = arith.muli %arg1, %c8_i32 : i32
    %1 = arith.addi %0, %c0_i32 : i32
    %2 = arith.index_cast %arg0 : i32 to index
    %3 = arith.index_cast %1 : i32 to index
    %4 = memref.load %arg2[%2, %3] : memref<2x32xi32, #tpu.memory_space<smem>>
    %5 = arith.index_cast %4 : i32 to index
    %c0 = arith.constant 0 : index
    %6 = vector.load %arg3[%5, %c0] : memref<256x128xf32, #tpu.memory_space<vmem>>, vector<1x128xf32>
    %7 = arith.index_cast %c0_i32 : i32 to index
    %c0_0 = arith.constant 0 : index
    %8 = vector.load %arg7[%7, %c0_0] : memref<8x128xf32, #tpu.memory_space<vmem>>, vector<1x128xf32>
    tpu.vector_store %arg7[%7, %c0_0], %6 {strides = array<i32>} : memref<8x128xf32, #tpu.memory_space<vmem>>, vector<1x128xf32>,
    %c1_i32 = arith.constant 1 : i32
    %c8_i32_1 = arith.constant 8 : i32
    %9 = arith.muli %arg1, %c8_i32_1 : i32
    %10 = arith.addi %9, %c1_i32 : i32
    %11 = arith.index_cast %arg0 : i32 to index
    %12 = arith.index_cast %10 : i32 to index
    %13 = memref.load %arg2[%11, %12] : memref<2x32xi32, #tpu.memory_space<smem>>
    %14 = arith.index_cast %13 : i32 to index
    %c0_2 = arith.constant 0 : index
    %15 = vector.load %arg3[%14, %c0_2] : memref<256x128xf32, #tpu.memory_space<vmem>>, vector<1x128xf32>
    %16 = arith.index_cast %c1_i32 : i32 to index
    %c0_3 = arith.constant 0 : index
    %17 = vector.load %arg7[%16, %c0_3] : memref<8x128xf32, #tpu.memory_space<vmem>>, vector<1x128xf32>
    tpu.vector_store %arg7[%16, %c0_3], %15 {strides = array<i32>} : memref<8x128xf32, #tpu.memory_space<vmem>>, vector<1x128xf32>,
    %c2_i32 = arith.constant 2 : i32
    %c8_i32_4 = arith.constant 8 : i32
    %18 = arith.muli %arg1, %c8_i32_4 : i32
    %19 = arith.addi %18, %c2_i32 : i32
    %20 = arith.index_cast %arg0 : i32 to index
    %21 = arith.index_cast %19 : i32 to index
    %22 = memref.load %arg2[%20, %21] : memref<2x32xi32, #tpu.memory_space<smem>>
    %23 = arith.index_cast %22 : i32 to index
    %c0_5 = arith.constant 0 : index
    %24 = vector.load %arg3[%23, %c0_5] : memref<256x128xf32, #tpu.memory_space<vmem>>, vector<1x128xf32>
    %25 = arith.index_cast %c2_i32 : i32 to index
    %c0_6 = arith.constant 0 : index
    %26 = vector.load %arg7[%25, %c0_6] : memref<8x128xf32, #tpu.memory_space<vmem>>, vector<1x128xf32>
    tpu.vector_store %arg7[%25, %c0_6], %24 {strides = array<i32>} : memref<8x128xf32, #tpu.memory_space<vmem>>, vector<1x128xf32>,
    %c3_i32 = arith.constant 3 : i32
    %c8_i32_7 = arith.constant 8 : i32
    %27 = arith.muli %arg1, %c8_i32_7 : i32
    %28 = arith.addi %27, %c3_i32 : i32
    %29 = arith.index_cast %arg0 : i32 to index
    %30 = arith.index_cast %28 : i32 to index
    %31 = memref.load %arg2[%29, %30] : memref<2x32xi32, #tpu.memory_space<smem>>
    %32 = arith.index_cast %31 : i32 to index
    %c0_8 = arith.constant 0 : index
    %33 = vector.load %arg3[%32, %c0_8] : memref<256x128xf32, #tpu.memory_space<vmem>>, vector<1x128xf32>
    %34 = arith.index_cast %c3_i32 : i32 to index
    %c0_9 = arith.constant 0 : index
    %35 = vector.load %arg7[%34, %c0_9] : memref<8x128xf32, #tpu.memory_space<vmem>>, vector<1x128xf32>
    tpu.vector_store %arg7[%34, %c0_9], %33 {strides = array<i32>} : memref<8x128xf32, #tpu.memory_space<vmem>>, vector<1x128xf32>,
    %c4_i32 = arith.constant 4 : i32
    %c8_i32_10 = arith.constant 8 : i32
    %36 = arith.muli %arg1, %c8_i32_10 : i32
    %37 = arith.addi %36, %c4_i32 : i32
    %38 = arith.index_cast %arg0 : i32 to index
    %39 = arith.index_cast %37 : i32 to index
    %40 = memref.load %arg2[%38, %39] : memref<2x32xi32, #tpu.memory_space<smem>>
    %41 = arith.index_cast %40 : i32 to index
    %c0_11 = arith.constant 0 : index
    %42 = vector.load %arg3[%41, %c0_11] : memref<256x128xf32, #tpu.memory_space<vmem>>, vector<1x128xf32>
    %43 = arith.index_cast %c4_i32 : i32 to index
    %c0_12 = arith.constant 0 : index
    %44 = vector.load %arg7[%43, %c0_12] : memref<8x128xf32, #tpu.memory_space<vmem>>, vector<1x128xf32>
    tpu.vector_store %arg7[%43, %c0_12], %42 {strides = array<i32>} : memref<8x128xf32, #tpu.memory_space<vmem>>, vector<1x128xf32>,
    %c5_i32 = arith.constant 5 : i32
    %c8_i32_13 = arith.constant 8 : i32
    %45 = arith.muli %arg1, %c8_i32_13 : i32
    %46 = arith.addi %45, %c5_i32 : i32
    %47 = arith.index_cast %arg0 : i32 to index
    %48 = arith.index_cast %46 : i32 to index
    %49 = memref.load %arg2[%47, %48] : memref<2x32xi32, #tpu.memory_space<smem>>
    %50 = arith.index_cast %49 : i32 to index
    %c0_14 = arith.constant 0 : index
    %51 = vector.load %arg3[%50, %c0_14] : memref<256x128xf32, #tpu.memory_space<vmem>>, vector<1x128xf32>
    %52 = arith.index_cast %c5_i32 : i32 to index
    %c0_15 = arith.constant 0 : index
    %53 = vector.load %arg7[%52, %c0_15] : memref<8x128xf32, #tpu.memory_space<vmem>>, vector<1x128xf32>
    tpu.vector_store %arg7[%52, %c0_15], %51 {strides = array<i32>} : memref<8x128xf32, #tpu.memory_space<vmem>>, vector<1x128xf32>,
    %c6_i32 = arith.constant 6 : i32
    %c8_i32_16 = arith.constant 8 : i32
    %54 = arith.muli %arg1, %c8_i32_16 : i32
    %55 = arith.addi %54, %c6_i32 : i32
    %56 = arith.index_cast %arg0 : i32 to index
    %57 = arith.index_cast %55 : i32 to index
    %58 = memref.load %arg2[%56, %57] : memref<2x32xi32, #tpu.memory_space<smem>>
    %59 = arith.index_cast %58 : i32 to index
    %c0_17 = arith.constant 0 : index
    %60 = vector.load %arg3[%59, %c0_17] : memref<256x128xf32, #tpu.memory_space<vmem>>, vector<1x128xf32>
    %61 = arith.index_cast %c6_i32 : i32 to index
    %c0_18 = arith.constant 0 : index
    %62 = vector.load %arg7[%61, %c0_18] : memref<8x128xf32, #tpu.memory_space<vmem>>, vector<1x128xf32>
    tpu.vector_store %arg7[%61, %c0_18], %60 {strides = array<i32>} : memref<8x128xf32, #tpu.memory_space<vmem>>, vector<1x128xf32>,
    %c7_i32 = arith.constant 7 : i32
    %c8_i32_19 = arith.constant 8 : i32
    %63 = arith.muli %arg1, %c8_i32_19 : i32
    %64 = arith.addi %63, %c7_i32 : i32
    %65 = arith.index_cast %arg0 : i32 to index
    %66 = arith.index_cast %64 : i32 to index
    %67 = memref.load %arg2[%65, %66] : memref<2x32xi32, #tpu.memory_space<smem>>
    %68 = arith.index_cast %67 : i32 to index
    %c0_20 = arith.constant 0 : index
    %69 = vector.load %arg3[%68, %c0_20] : memref<256x128xf32, #tpu.memory_space<vmem>>, vector<1x128xf32>
    %70 = arith.index_cast %c7_i32 : i32 to index
    %c0_21 = arith.constant 0 : index
    %71 = vector.load %arg7[%70, %c0_21] : memref<8x128xf32, #tpu.memory_space<vmem>>, vector<1x128xf32>
    tpu.vector_store %arg7[%70, %c0_21], %69 {strides = array<i32>} : memref<8x128xf32, #tpu.memory_space<vmem>>, vector<1x128xf32>,
    %c8_i32_22 = arith.constant 8 : i32
    %c0_23 = arith.constant 0 : index
    %c0_24 = arith.constant 0 : index
    %72 = vector.load %arg7[%c0_23, %c0_24] : memref<8x128xf32, #tpu.memory_space<vmem>>, vector<8x128xf32>
    %c0_25 = arith.constant 0 : index
    %c0_26 = arith.constant 0 : index
    %73 = vector.load %arg4[%c0_25, %c0_26] : memref<8x128xf32, #tpu.memory_space<vmem>>, vector<8x128xf32>
    %74 = arith.addf %72, %73 : vector<8x128xf32>
    %c0_27 = arith.constant 0 : index
    %c0_28 = arith.constant 0 : index
    %75 = vector.load %arg5[%c0_27, %c0_28] : memref<2x128xf32, #tpu.memory_space<vmem>>, vector<2x128xf32>
    %76 = vector.shape_cast %75 : vector<2x128xf32> to vector<2x1x128xf32>
    %77 = vector.shape_cast %74 : vector<8x128xf32> to vector<1x8x128xf32>
    %78 = vector.broadcast %76 : vector<2x1x128xf32> to vector<2x8x128xf32>
    %79 = vector.broadcast %77 : vector<1x8x128xf32> to vector<2x8x128xf32>
    %80 = arith.addf %78, %79 : vector<2x8x128xf32>
    %81 = vector.shape_cast %80 : vector<2x8x128xf32> to vector<1x2x8x128xf32>
    %c0_29 = arith.constant 0 : index
    %c0_30 = arith.constant 0 : index
    %c0_31 = arith.constant 0 : index
    %c0_32 = arith.constant 0 : index
    %82 = vector.load %arg6[%c0_29, %c0_30, %c0_31, %c0_32] : memref<1x2x8x128xf32, #tpu.memory_space<vmem>>, vector<1x2x8x128xf32>
    tpu.vector_store %arg6[%c0_29, %c0_30, %c0_31, %c0_32], %81 {strides = array<i32>} : memref<1x2x8x128xf32, #tpu.memory_space<vmem>>, vector<1x2x8x128xf32>,
    return
  }
  func.func @transform_0(%arg0: i32, %arg1: i32, %arg2: memref<2x32xi32, #tpu.memory_space<smem>>) -> (i32, i32) {
    %c0_i32 = arith.constant 0 : i32
    %c0_i32_0 = arith.constant 0 : i32
    %c0_i32_1 = arith.constant 0 : i32
    return %c0_i32, %c0_i32_0 : i32, i32
  }
  func.func @transform_1(%arg0: i32, %arg1: i32, %arg2: memref<2x32xi32, #tpu.memory_space<smem>>) -> (i32, i32) {
    %c0_i32 = arith.constant 0 : i32
    %c0_i32_0 = arith.constant 0 : i32
    return %arg1, %c0_i32 : i32, i32
  }
  func.func @transform_2(%arg0: i32, %arg1: i32, %arg2: memref<2x32xi32, #tpu.memory_space<smem>>) -> (i32, i32) {
    %c0_i32 = arith.constant 0 : i32
    %c0_i32_0 = arith.constant 0 : i32
    %c0_i32_1 = arith.constant 0 : i32
    return %c0_i32, %c0_i32_0 : i32, i32
  }
  func.func @transform_3(%arg0: i32, %arg1: i32, %arg2: memref<2x32xi32, #tpu.memory_space<smem>>) -> (i32, i32, i32, i32) {
    %c0_i32 = arith.constant 0 : i32
    %c0_i32_0 = arith.constant 0 : i32
    %c0_i32_1 = arith.constant 0 : i32
    return %arg0, %c0_i32, %arg1, %c0_i32_0 : i32, i32, i32, i32
  }
}

</mosaic_0001>

<llo_original>
// kernel: tpu_custom_call.1
$region0: #{tpu_custom_call.1}
  #allocation0 [shape = 'u32[]', space=smem, size = 0x4, offset = 0x4, fixed_abs, tag = 'smem constant byte address 0x4 - core index']
  #allocation1 [shape = 'u32[144,128]{1,0:T(1,128)}', space=vmem, size = 0x12000, scoped, tag = 'internal scratch']
  #allocation2 [shape = 'f32[8,128]{1,0:T(8,128)}', space=vmem, size = 0x1000, scoped, tag = 'scratch operand']
  #allocation3 [shape = 's32[1]{0}', space=sflag, size = 0x4, scoped, tag = 'scoped memory for tpu_custom_call.1']
  #allocation4 [shape = 'u8[1024]{0}', space=smem, size = 0x400, scoped, tag = 'prefetched SMEM operand 0']
  %s0 = inlined_call_operand.hbm [shape: s32[2,32], index: 0, kind: input, shape index: {}]
  %s1 = inlined_call_operand.hbm [shape: f32[256,128], index: 1, kind: input, shape index: {}]
  %s2 = inlined_call_operand.hbm [shape: f32[64,128], index: 2, kind: input, shape index: {}]
  %s3 = inlined_call_operand.vmem [shape: f32[2,128], index: 3, kind: input, shape index: {}]
  %s4 = inlined_call_operand.hbm [shape: f32[2,2,32,128], index: 4, kind: output, shape index: {}]
  %s5 = sld [smem:[#allocation0]]
  $region53: #{tpu_custom_call.1} parent=0
    _
  %s7 = ssub.s32 1, %s5
  %s8 = scalar_select 0, %s7, %s5
  %10 = dma.hbm_to_smem %s0, 32, [#allocation4], [#allocation3]
  %11 = dma.done [#allocation3], 32
  %12 = sfence
  $region1: #{tpu_custom_call.1} parent=0
    #allocation5 [shape = 'u8[131072]{0}', space=vmem, size = 0x20000, scoped, tag = 'input window, operand 1, single buffered']
    #allocation6 [shape = 's32[2]{0}', space=sflag, size = 0x8, scoped, tag = 'scoped memory for tpu_custom_call.1']
    #allocation7 [shape = 's32[2]{0}', space=sflag, size = 0x8, scoped, tag = 'scoped memory for tpu_custom_call.1']
    #allocation8 [shape = 'u8[8192]{0}', space=vmem, size = 0x2000, scoped, tag = 'input window, operand 2']
    #allocation9 [shape = 's32[2]{0}', space=sflag, size = 0x8, scoped, tag = 'scoped memory for tpu_custom_call.1']
    #allocation10 [shape = 'u8[16384]{0}', space=vmem, size = 0x4000, scoped, tag = 'output window, operand 0']
    %13 = vsyncpa [#allocation6], 0
    %14 = vsyncpa [#allocation9], 0
    %s15 = scalar_lea.sflag [#allocation9], 1
    %16 = vsyncpa %s15, 0
    %17 = vsyncpa [#allocation7], 0
    %s18 = scalar_lea.sflag [#allocation7], 1
    %19 = vsyncpa %s18, 0
    loop: start=0, step=1, limit=10
    $region2: #{tpu_custom_call.1} parent=1 // loop_pre_header
      _
    $region3: #{tpu_custom_call.1} parent=1 // loop_header
      %s21 = sphi 0, %s25
      %p22 = scmp.ge.s32.totalorder %s21, 10
      %s28 = sphi 0, %s40
      %s29 = sphi 0, %s36
      %s30 = sphi 0, %s28
      %s31 = sphi 0, %s29
      %s32 = sphi 0, %s30
      %s33 = sphi 0, %s31
      %s41 = sphi 0, %s41
      %s43 = sphi 0, %s41
      %s44 = sphi 0, %s43
      %s58 = sphi 0, %s44
      %s64 = sphi 0, %s66
      %s67 = sphi 0, %s64
      %s68 = sphi 0, %s67
      %s84 = sphi 0, %s68
      %s88 = sphi 0, %s88
      %s90 = sphi 0, %s88
      %s91 = sphi 0, %s90
      %s105 = sphi 0, %s91
      %s113 = sphi 0, %s115
      %s116 = sphi 0, %s113
      %s117 = sphi 0, %s116
      %s133 = sphi 0, %s117
    $region4: #{tpu_custom_call.1} parent=1 // loop_header_branch
      %24 = sbr.rel (%p22) target = $region8
    $region5: #{tpu_custom_call.1} parent=1 // loop_body
      %s26 = ssub.s32 %s21, 1
      %s27 = ssub.s32 %s21, 2
      %s34 = sadd.s32 1, %s29
      %p35 = scmp.ge.s32.totalorder %s34, 4
      %s36 = scalar_select %p35, 0, %s34
      %s37 = sadd.s32 1, %s28
      %s38 = scalar_select %p35, %s37, %s28
      %p39 = scmp.ge.s32.totalorder %s38, 2
      %s40 = scalar_select %p39, 0, %s38
      %s42 = sadd.s32 %s41, 1
      %p45 = scmp.eq.s32.totalorder %s21, 7
      %p46 = scmp.ne.s32.totalorder %s41, %s43
      %p47 = scmp.eq.s32.totalorder %s21, 0
      %p48 = por %p46, %p47
      %p49 = scmp.ne.s32.totalorder %s41, %s43
      %p50 = scmp.eq.s32.totalorder %s26, 7
      %p51 = por %p49, %p50
      %p52 = scmp.ne.s32.totalorder %s43, %s44
      %p53 = scmp.eq.s32.totalorder %s26, 0
      %p54 = por %p52, %p53
      %p55 = scmp.ne.s32.totalorder %s43, %s44
      %p56 = scmp.eq.s32.totalorder %s27, 7
      %p57 = por %p55, %p56
      %p59 = scmp.ne.s32.totalorder %s44, %s58
      %p60 = scmp.eq.s32.totalorder %s27, 0
      %p61 = por %p59, %p60
      %s62 = ssub.s32 %s29, %s36
      %p63 = scmp.eq.s32.totalorder %s62, 0
      %s65 = sadd.s32 %s64, 1
      %s66 = scalar_select %p63, %s64, %s65
      %p69 = pneg %p63
      %p70 = scmp.eq.s32.totalorder %s21, 7
      %p71 = por %p69, %p70
      %p72 = scmp.ne.s32.totalorder %s64, %s67
      %p73 = scmp.eq.s32.totalorder %s21, 0
      %p74 = por %p72, %p73
      %p75 = scmp.ne.s32.totalorder %s64, %s67
      %p76 = scmp.eq.s32.totalorder %s26, 7
      %p77 = por %p75, %p76
      %p78 = scmp.ne.s32.totalorder %s67, %s68
      %p79 = scmp.eq.s32.totalorder %s26, 0
      %p80 = por %p78, %p79
      %p81 = scmp.ne.s32.totalorder %s67, %s68
      %p82 = scmp.eq.s32.totalorder %s27, 7
      %p83 = por %p81, %p82
      %p85 = scmp.ne.s32.totalorder %s68, %s84
      %p86 = scmp.eq.s32.totalorder %s27, 0
      %p87 = por %p85, %p86
      %s89 = sadd.s32 %s88, 1
      %p92 = scmp.eq.s32.totalorder %s21, 7
      %p93 = scmp.ne.s32.totalorder %s88, %s90
      %p94 = scmp.eq.s32.totalorder %s21, 0
      %p95 = por %p93, %p94
      %p96 = scmp.ne.s32.totalorder %s88, %s90
      %p97 = scmp.eq.s32.totalorder %s26, 7
      %p98 = por %p96, %p97
      %p99 = scmp.ne.s32.totalorder %s90, %s91
      %p100 = scmp.eq.s32.totalorder %s26, 0
      %p101 = por %p99, %p100
      %p102 = scmp.ne.s32.totalorder %s90, %s91
      %p103 = scmp.eq.s32.totalorder %s27, 7
      %p104 = por %p102, %p103
      %p106 = scmp.ne.s32.totalorder %s91, %s105
      %p107 = scmp.eq.s32.totalorder %s27, 0
      %p108 = por %p106, %p107
      %s109 = ssub.s32 %s28, %s40
      %s110 = ssub.s32 %s29, %s36
      %s111 = sor.u32 %s109, %s110
      %p112 = scmp.eq.s32.totalorder %s111, 0
      %s114 = sadd.s32 %s113, 1
      %s115 = scalar_select %p112, %s113, %s114
      %p118 = pneg %p112
      %p119 = scmp.eq.s32.totalorder %s21, 7
      %p120 = por %p118, %p119
      %p121 = scmp.ne.s32.totalorder %s113, %s116
      %p122 = scmp.eq.s32.totalorder %s21, 0
      %p123 = por %p121, %p122
      %p124 = scmp.ne.s32.totalorder %s113, %s116
      %p125 = scmp.eq.s32.totalorder %s26, 7
      %p126 = por %p124, %p125
      %p127 = scmp.ne.s32.totalorder %s116, %s117
      %p128 = scmp.eq.s32.totalorder %s26, 0
      %p129 = por %p127, %p128
      %p130 = scmp.ne.s32.totalorder %s116, %s117
      %p131 = scmp.eq.s32.totalorder %s27, 7
      %p132 = por %p130, %p131
      %p134 = scmp.ne.s32.totalorder %s117, %s133
      %p135 = scmp.eq.s32.totalorder %s27, 0
      %p136 = por %p134, %p135
      %p137 = scmp.le.s32.totalorder 1, %s21
      %p138 = scmp.lt.s32.totalorder %s21, 9
      %p139 = pnand %p137, %p138
      %p140 = pneg %p139
      // Predicated region
      $region9: #{tpu_custom_call.1} parent=5 // pred_check
        _
      $region10: #{tpu_custom_call.1} parent=5 // pred_check_branch
        %142 = sbr.rel (%p139) target = $region12
      $region11: #{tpu_custom_call.1} parent=5 // pred_region
        %s143 = ssub.s32 %s21, 1
        // Predicated region
        $region13: #{tpu_custom_call.1} parent=11 // pred_check
          %p144 = pneg %p54
        $region14: #{tpu_custom_call.1} parent=11 // pred_check_branch
          %146 = sbr.rel (%p144) target = $region16
        $region15: #{tpu_custom_call.1} parent=11 // pred_region
          %s148 = ssub.s32 4096, 4096
          %149 = vsyncadd [#allocation6], %s148
          %s150 = sshll.u32 [#allocation5], 4
          %s151 = int_to_ptr.vmem [resolvable:$true] %s150
          %156 = dma.hbm_to_vmem [thread:$0]  %s1, 4096, %s151, [#allocation6], 128, 128, 8
        $region16: #{tpu_custom_call.1} parent=11 // pred_fallthru
          _
        // Predicated region
        $region17: #{tpu_custom_call.1} parent=11 // pred_check
          %p157 = pneg %p101
        $region18: #{tpu_custom_call.1} parent=11 // pred_check_branch
          %159 = sbr.rel (%p157) target = $region20
        $region19: #{tpu_custom_call.1} parent=11 // pred_region
          _
        $region20: #{tpu_custom_call.1} parent=11 // pred_fallthru
          _
      $region12: #{tpu_custom_call.1} parent=5 // pred_fallthru
        _
      %p160 = scmp.lt.s32.totalorder %s21, 8
      // Predicated region
      $region21: #{tpu_custom_call.1} parent=5 // pred_check
        %p161 = pneg %p160
      $region22: #{tpu_custom_call.1} parent=5 // pred_check_branch
        %163 = sbr.rel (%p161) target = $region24
      $region23: #{tpu_custom_call.1} parent=5 // pred_region
        // Predicated region
        $region25: #{tpu_custom_call.1} parent=23 // pred_check
          %p164 = pneg %p74
        $region26: #{tpu_custom_call.1} parent=23 // pred_check_branch
          %166 = sbr.rel (%p164) target = $region28
        $region27: #{tpu_custom_call.1} parent=23 // pred_region
          %s167 = sand.u32 %s64, 1
          %s168 = scalar_lea.sflag [#allocation9], %s167
          %s169 = sand.u32 %s64, 1
          %s170 = smul.addr %s169, 8
          %s171 = scalar_lea.vmem [#allocation8], %s170
          %s173 = ssub.s32 128, 128
          %174 = vsyncadd %s168, %s173
          %s175 = smul.addr %s29, 128
          %s176 = scalar_lea.hbm %s2, %s175
          %s178 = sshll.u32 %s171, 4
          %s179 = int_to_ptr.vmem [resolvable:$true] %s178
          %181 = dma.hbm_to_vmem [thread:$0]  %s176, 128, %s179, %s168
        $region28: #{tpu_custom_call.1} parent=23 // pred_fallthru
          _
      $region24: #{tpu_custom_call.1} parent=5 // pred_fallthru
        _
      %p182 = scmp.le.s32.totalorder 1, %s21
      %p183 = scmp.lt.s32.totalorder %s21, 9
      %p184 = pnand %p182, %p183
      %p185 = pneg %p184
      // Predicated region
      $region29: #{tpu_custom_call.1} parent=5 // pred_check
        _
      $region30: #{tpu_custom_call.1} parent=5 // pred_check_branch
        %187 = sbr.rel (%p184) target = $region32
      $region31: #{tpu_custom_call.1} parent=5 // pred_region
        %s188 = ssub.s32 %s21, 1
        // Predicated region
        $region33: #{tpu_custom_call.1} parent=31 // pred_check
          %p189 = pneg %p54
        $region34: #{tpu_custom_call.1} parent=31 // pred_check_branch
          %191 = sbr.rel (%p189) target = $region36
        $region35: #{tpu_custom_call.1} parent=31 // pred_region
          %192 = dma.done [#allocation6], 4096
        $region36: #{tpu_custom_call.1} parent=31 // pred_fallthru
          _
        %s193 = sand.u32 %s67, 1
        %s194 = scalar_lea.sflag [#allocation9], %s193
        %s195 = sand.u32 %s67, 1
        %s196 = smul.addr %s195, 8
        %s197 = scalar_lea.vmem [#allocation8], %s196
        // Predicated region
        $region37: #{tpu_custom_call.1} parent=31 // pred_check
          %p198 = pneg %p80
        $region38: #{tpu_custom_call.1} parent=31 // pred_check_branch
          %200 = sbr.rel (%p198) target = $region40
        $region39: #{tpu_custom_call.1} parent=31 // pred_region
          %201 = dma.done %s194, 128
        $region40: #{tpu_custom_call.1} parent=31 // pred_fallthru
          _
        %p202 = pneg %p54
        %p203 = pneg %p51
        %s204 = sand.u32 %s67, 1
        %s205 = scalar_lea.sflag [#allocation9], %s204
        %s206 = sand.u32 %s67, 1
        %s207 = smul.addr %s206, 8
        %s208 = scalar_lea.vmem [#allocation8], %s207
        %p209 = pneg %p80
        %p210 = pneg %p77
        %p211 = pneg %p101
        %p212 = pneg %p98
        %p213 = pneg %p129
        %p214 = pneg %p126
        %s215 = sand.u32 %s116, 1
        %s216 = scalar_lea.sflag [#allocation7], %s215
        %s217 = sand.u32 %s116, 1
        %s218 = smul.addr %s217, 16
        %s219 = scalar_lea.vmem [#allocation10], %s218
        %s220 = smul.u32 %s31, 8
        %s221 = sshra.s32 %s220, 7
        %s222 = sand.u32 %s220, 127
        %s223 = sadd.s32 %s221, %s30
        %s224 = smul.u32 %s223, 128
        %s225 = sshra.s32 %s220, 7
        %s226 = sand.u32 %s220, 127
        %s227 = sadd.s32 %s224, %s226
        %s228 = sld [smem:[#allocation4 + %s227]]
        %s229 = scalar_lea.vmem [#allocation5], %s228
        %v230 = vld [vmem:[%s229] sm:$0x1]
        %231 = vst [vmem:[#allocation2] sm:$0x1] %v230
        %s232 = sadd.s32 %s220, 1
        %s233 = sshra.s32 %s232, 7
        %s234 = sand.u32 %s232, 127
        %s235 = sadd.s32 %s233, %s30
        %s236 = smul.u32 %s235, 128
        %s237 = sshra.s32 %s232, 7
        %s238 = sand.u32 %s232, 127
        %s239 = sadd.s32 %s236, %s238
        %s240 = sld [smem:[#allocation4 + %s239]]
        %s241 = scalar_lea.vmem [#allocation5], %s240
        %v242 = vld [vmem:[%s241] sm:$0x1]
        %243 = vst [vmem:[#allocation2 + $0x1] sm:$0x1] %v242
        %s244 = sadd.s32 %s220, 2
        %s245 = sshra.s32 %s244, 7
        %s246 = sand.u32 %s244, 127
        %s247 = sadd.s32 %s245, %s30
        %s248 = smul.u32 %s247, 128
        %s249 = sshra.s32 %s244, 7
        %s250 = sand.u32 %s244, 127
        %s251 = sadd.s32 %s248, %s250
        %s252 = sld [smem:[#allocation4 + %s251]]
        %s253 = scalar_lea.vmem [#allocation5], %s252
        %v254 = vld [vmem:[%s253] sm:$0x1]
        %255 = vst [vmem:[#allocation2 + $0x2] sm:$0x1] %v254
        %s256 = sadd.s32 %s220, 3
        %s257 = sshra.s32 %s256, 7
        %s258 = sand.u32 %s256, 127
        %s259 = sadd.s32 %s257, %s30
        %s260 = smul.u32 %s259, 128
        %s261 = sshra.s32 %s256, 7
        %s262 = sand.u32 %s256, 127
        %s263 = sadd.s32 %s260, %s262
        %s264 = sld [smem:[#allocation4 + %s263]]
        %s265 = scalar_lea.vmem [#allocation5], %s264
        %v266 = vld [vmem:[%s265] sm:$0x1]
        %267 = vst [vmem:[#allocation2 + $0x3] sm:$0x1] %v266
        %s268 = sadd.s32 %s220, 4
        %s269 = sshra.s32 %s268, 7
        %s270 = sand.u32 %s268, 127
        %s271 = sadd.s32 %s269, %s30
        %s272 = smul.u32 %s271, 128
        %s273 = sshra.s32 %s268, 7
        %s274 = sand.u32 %s268, 127
        %s275 = sadd.s32 %s272, %s274
        %s276 = sld [smem:[#allocation4 + %s275]]
        %s277 = scalar_lea.vmem [#allocation5], %s276
        %v278 = vld [vmem:[%s277] sm:$0x1]
        %279 = vst [vmem:[#allocation2 + $0x4] sm:$0x1] %v278
        %s280 = sadd.s32 %s220, 5
        %s281 = sshra.s32 %s280, 7
        %s282 = sand.u32 %s280, 127
        %s283 = sadd.s32 %s281, %s30
        %s284 = smul.u32 %s283, 128
        %s285 = sshra.s32 %s280, 7
        %s286 = sand.u32 %s280, 127
        %s287 = sadd.s32 %s284, %s286
        %s288 = sld [smem:[#allocation4 + %s287]]
        %s289 = scalar_lea.vmem [#allocation5], %s288
        %v290 = vld [vmem:[%s289] sm:$0x1]
        %291 = vst [vmem:[#allocation2 + $0x5] sm:$0x1] %v290
        %s292 = sadd.s32 %s220, 6
        %s293 = sshra.s32 %s292, 7
        %s294 = sand.u32 %s292, 127
        %s295 = sadd.s32 %s293, %s30
        %s296 = smul.u32 %s295, 128
        %s297 = sshra.s32 %s292, 7
        %s298 = sand.u32 %s292, 127
        %s299 = sadd.s32 %s296, %s298
        %s300 = sld [smem:[#allocation4 + %s299]]
        %s301 = scalar_lea.vmem [#allocation5], %s300
        %v302 = vld [vmem:[%s301] sm:$0x1]
        %303 = vst [vmem:[#allocation2 + $0x6] sm:$0x1] %v302
        %s304 = sadd.s32 %s220, 7
        %s305 = sshra.s32 %s304, 7
        %s306 = sand.u32 %s304, 127
        %s307 = sadd.s32 %s305, %s30
        %s308 = smul.u32 %s307, 128
        %s309 = sshra.s32 %s304, 7
        %s310 = sand.u32 %s304, 127
        %s311 = sadd.s32 %s308, %s310
        %s312 = sld [smem:[#allocation4 + %s311]]
        %s313 = scalar_lea.vmem [#allocation5], %s312
        %v314 = vld [vmem:[%s313] sm:$0x1]
        %315 = vst [vmem:[#allocation2 + $0x7] sm:$0x1] %v314
        %v316 = vld [vmem:[#allocation2] sm:$0xff]
        %v317 = vld [vmem:[%s197] sm:$0xff]
        %v318 = vadd.f32 %v316, %v317
        %v319 = vld [vmem:[%s3] sm:$0x3]
        %v322 = vunpack.c.l.s4 1966171168
        %v323 = vunpack.c.0.s8 %v322
        %v324 = vlaneseq
        %v325 = vshrl.u32 %v324, 7
        %v326 = vsub.s32 %v323, %v325
        %v327 = vrot.slane %v319, %v326
        %v328 = vcombine.high %v327, %v327
        %v330 = vunpack.c.l.s4 1966171168
        %v331 = vunpack.c.0.s8 %v330
        %v332 = vlaneseq
        %v333 = vshrl.u32 %v332, 7
        %v334 = vsub.s32 %v331, %v333
        %v335 = vrot.slane %v327, %v334
        %v337 = vunpack.c.l.s4 1966171168
        %v338 = vunpack.c.0.s8 %v337
        %v339 = vlaneseq
        %v340 = vshrl.u32 %v339, 7
        %v341 = vsub.s32 %v338, %v340
        %v342 = vrot.slane %v328, %v341
        %v343 = vlaneseq
        %v344 = vshrl.u32 %v343, 7
        %v345 = vsub.s32 0, %v344
        %v346 = vrot.slane %v335, %v345
        %v347 = vlaneseq
        %v348 = vshrl.u32 %v347, 7
        %v349 = vsub.s32 0, %v348
        %v350 = vrot.slane %v342, %v349
        %v353 = vadd.f32 %v346, %v318
        %v354 = vadd.f32 %v350, %v318
        %355 = vst [vmem:[%s219] sm:$0xff] %v353
        %356 = vst [vmem:[%s219 + $0x8] sm:$0xff] %v354
        %s357 = sand.u32 %s116, 1
        %s358 = scalar_lea.sflag [#allocation7], %s357
        %s359 = sand.u32 %s116, 1
        %s360 = smul.addr %s359, 16
        %s361 = scalar_lea.vmem [#allocation10], %s360
        // Predicated region
        $region41: #{tpu_custom_call.1} parent=31 // pred_check
          %p362 = pneg %p126
        $region42: #{tpu_custom_call.1} parent=31 // pred_check_branch
          %364 = sbr.rel (%p362) target = $region44
        $region43: #{tpu_custom_call.1} parent=31 // pred_region
          %s366 = ssub.s32 256, 256
          %367 = vsyncadd %s358, %s366
          %s368 = smul.addr %s30, 8
          %s369 = sadd.s32 %s31, %s368
          %s370 = smul.addr %s369, 128
          %s371 = scalar_lea.hbm %s4, %s370
          %s372 = sshll.u32 %s361, 4
          %s373 = int_to_ptr.vmem [resolvable:$true] %s372
          %378 = dma.vmem_to_hbm [thread:$0]  %s373, 256, %s371, %s358, 128, 512, 8
        $region44: #{tpu_custom_call.1} parent=31 // pred_fallthru
          _
      $region32: #{tpu_custom_call.1} parent=5 // pred_fallthru
        _
      %p379 = scmp.le.s32.totalorder 2, %s21
      // Predicated region
      $region45: #{tpu_custom_call.1} parent=5 // pred_check
        %p380 = pneg %p379
      $region46: #{tpu_custom_call.1} parent=5 // pred_check_branch
        %382 = sbr.rel (%p380) target = $region48
      $region47: #{tpu_custom_call.1} parent=5 // pred_region
        %s383 = ssub.s32 %s21, 2
        // Predicated region
        $region49: #{tpu_custom_call.1} parent=47 // pred_check
          %p384 = pneg %p132
        $region50: #{tpu_custom_call.1} parent=47 // pred_check_branch
          %386 = sbr.rel (%p384) target = $region52
        $region51: #{tpu_custom_call.1} parent=47 // pred_region
          %s387 = sand.u32 %s117, 1
          %s388 = scalar_lea.sflag [#allocation7], %s387
          %s389 = sand.u32 %s117, 1
          %s390 = smul.addr %s389, 16
          %s391 = scalar_lea.vmem [#allocation10], %s390
          %392 = dma.done %s388, 256
        $region52: #{tpu_custom_call.1} parent=47 // pred_fallthru
          _
      $region48: #{tpu_custom_call.1} parent=5 // pred_fallthru
        _
    $region6: #{tpu_custom_call.1} parent=1 // loop_footer
      %s25 = sadd.s32 1, %s21
    $region7: #{tpu_custom_call.1} parent=1 // loop_footer_branch
      %20 = sbr.rel target = $region3
    $region8: #{tpu_custom_call.1} parent=1 // loop_exit
      _
    %393 = vsyncpa [#allocation6], 1
    %s394 = scalar_lea.sflag [#allocation6], 1
    %395 = vsyncpa %s394, 1
    %396 = vsyncpa [#allocation9], 1
    %s397 = scalar_lea.sflag [#allocation9], 1
    %398 = vsyncpa %s397, 1
    %399 = vsyncpa [#allocation7], 1
    %s400 = scalar_lea.sflag [#allocation7], 1
    %401 = vsyncpa %s400, 1

</llo_original>
